<compile_context>
chip_gen: v5e
topology: v5e:2x2
jax: 0.10.0
libtpu: 0.0.40
codegen_flags: <defaults>
</compile_context>

<pallas_src>
import jax
import jax.numpy as jnp
from jax.experimental import pallas as pl
from jax.experimental.pallas import tpu as pltpu

Nin = 1
Nhid = 10
Nout = 2

_LANES = 128          # vreg lane width
_SUBLANES = 8         # vreg sublane depth
_MAX_TILE_ROWS = 512  # up to 512 * 128 = 64K batch points per grid step
_CHUNK_ROWS = 64      # 64 x 128 f32 = 8 vregs per chunk -> register-resident


def _round_up(a, b):
    return (a + b - 1) // b * b


def _mlp_kernel(w1_ref, b1_ref, w2_ref, c_ref, x_ref, o_ref):
    """One batch tile of the folded 2-layer MLP, batch lane+sublane dense.

    w1_ref: SMEM (Nhid,)        -- 0.5 * lc1.weight  (Nin == 1 -> Nhid scalars)
    b1_ref: SMEM (Nhid,)        -- 0.5 * lc1.bias
    w2_ref: SMEM (Nout * Nhid,) -- 0.5 * lc2.weight, row-major flattened
    c_ref : SMEM (Nout,)        -- 0.5 * sum_k lc2.weight[j, k]
    x_ref : VMEM (TR, 128)      -- TR*128 mesh points
    o_ref : VMEM (Nout, TR, 128)
    """
    tile_rows = x_ref.shape[0]

    # Hoist the ~42 SMEM parameter scalar reads out of the chunk loop.
    w1s = [w1_ref[k] for k in range(Nhid)]
    b1s = [b1_ref[k] for k in range(Nhid)]
    w2s = [[w2_ref[j * Nhid + k] for k in range(Nhid)] for j in range(Nout)]
    cs = [c_ref[j] for j in range(Nout)]

    # Inner chunk loop: keep accumulators / tanh temporaries in vregs, one
    # store per output channel per chunk. All slices are static and
    # (8,128)-aligned, so loads/stores are full-width and unmasked.
    for start in range(0, tile_rows, _CHUNK_ROWS):
        size = min(_CHUNK_ROWS, tile_rows - start)
        xc = x_ref[start:start + size, :]
        acc = [None] * Nout
        for k in range(Nhid):
            # sigmoid folded: tanh(0.5*w1*x + 0.5*b1); single EUP op.
            t = jnp.tanh(xc * w1s[k] + b1s[k])
            for j in range(Nout):
                v = w2s[j][k] * t                  # VPU broadcast FMA; no MXU
                acc[j] = v if acc[j] is None else acc[j] + v
        for j in range(Nout):
            o_ref[j, start:start + size, :] = (acc[j] + cs[j]).astype(o_ref.dtype)


def _forward_full(x, w1, b1, w2, out_dtype=jnp.float32):
    """Runs the MLP on every mesh point.

    x : (N, Nin) or (N,) float32 mesh points (Nin == 1)
    w1: (Nhid, Nin)  -- lc1.weight
    b1: (Nhid,)      -- lc1.bias
    w2: (Nout, Nhid) -- lc2.weight
    out_dtype: jnp.float32 (default). jnp.bfloat16 halves output HBM traffic
               on v5e if the downstream loss tolerates it; compute stays f32.
    Returns o_flat of shape (Nout, N), channel-major.
    """
    x = jnp.asarray(x, jnp.float32)
    flat = x.reshape(-1)          # Nin == 1
    n = flat.shape[0]

    # Pad only to 8*128 granularity; the tail grid block is handled by
    # Pallas' masked writeback, so no padding up to the (large) tile size.
    n_pad = _round_up(n, _SUBLANES * _LANES)
    if n_pad != n:
        flat = jnp.pad(flat, (0, n_pad - n))
    rows = n_pad // _LANES
    x2 = flat.reshape(rows, _LANES)

    # Large tile to amortize per-grid-step overhead, capped so the parallel
    # grid has >= 2 steps when the mesh allows (v7x dual-TC sharding).
    tile_rows = min(_MAX_TILE_ROWS,
                    _round_up(max(rows // 2, _SUBLANES), _SUBLANES))
    grid = (pl.cdiv(rows, tile_rows),)

    # Fold the sigmoid affine constants into the parameters (wrapper-side,
    # ~40 scalars -> free): sigmoid(z) = 0.5*tanh(0.5*z) + 0.5.
    w1h = 0.5 * jnp.asarray(w1, jnp.float32).reshape(Nhid)
    b1h = 0.5 * jnp.asarray(b1, jnp.float32).reshape(Nhid)
    w2f = jnp.asarray(w2, jnp.float32).reshape(Nout, Nhid)
    w2h = (0.5 * w2f).reshape(Nout * Nhid)
    cj = 0.5 * jnp.sum(w2f, axis=1)            # (Nout,)

    o = pl.pallas_call(
        _mlp_kernel,
        out_shape=jax.ShapeDtypeStruct((Nout, rows, _LANES), out_dtype),
        grid=grid,
        in_specs=[
            pl.BlockSpec(memory_space=pltpu.MemorySpace.SMEM),  # w1h
            pl.BlockSpec(memory_space=pltpu.MemorySpace.SMEM),  # b1h
            pl.BlockSpec(memory_space=pltpu.MemorySpace.SMEM),  # w2h
            pl.BlockSpec(memory_space=pltpu.MemorySpace.SMEM),  # cj
            pl.BlockSpec((tile_rows, _LANES), lambda i: (i, 0)),
        ],
        out_specs=pl.BlockSpec((Nout, tile_rows, _LANES), lambda i: (0, i, 0)),
        compiler_params=pltpu.CompilerParams(
            dimension_semantics=("parallel",)),
    )(w1h, b1h, w2h, cj, x2)

    # (Nout, N): channel-major, batch on lanes; drop padding.
    return o.reshape(Nout, n_pad)[:, :n]


def neural_network_forward(x, w1, b1, w2):
    """Replicates NeuralNetwork.forward: returns (o.squeeze()[0], o.squeeze()[1]).

    N == 1: squeeze -> (Nout,) vector, return its two scalar entries.
    N  > 1: squeeze -> (N, Nout), return the output rows for mesh points 0 and 1
            (literal torch semantics of o.squeeze()[0], o.squeeze()[1]).
    """
    o_flat = _forward_full(x, w1, b1, w2)      # (Nout, N)
    n = o_flat.shape[1]
    if n == 1:
        return o_flat[0, 0], o_flat[1, 0]
    return o_flat[:, 0], o_flat[:, 1]


if __name__ == "__main__":
    key = jax.random.PRNGKey(0)
    k_b, k_w1, k_w2, k_x, k_x2 = jax.random.split(key, 5)

    # Deterministic parameter init matching the torch module-level tensors:
    #   B  = rand(Nhid) * 2 - 1
    #   W1 = rand(Nhid, Nin) * -1.0
    #   W2 = rand(Nout, Nhid)
    b1 = jax.random.uniform(k_b, (Nhid,), jnp.float32) * 2.0 - 1.0
    w1 = jax.random.uniform(k_w1, (Nhid, Nin), jnp.float32) * -1.0
    w2 = jax.random.uniform(k_w2, (Nout, Nhid), jnp.float32)

    def ref_full(xx):
        return jax.nn.sigmoid(xx.reshape(-1, Nin) @ w1.T + b1[None, :]) @ w2.T

    # --- Small batch: exercises the module's exact forward contract. ---
    N = 8
    x = jax.random.uniform(k_x, (N, Nin), jnp.float32)
    out0, out1 = neural_network_forward(x, w1, b1, w2)
    out0 = jax.block_until_ready(out0)
    out1 = jax.block_until_ready(out1)
    o_sq = jnp.squeeze(ref_full(x))
    assert jnp.allclose(out0, o_sq[0], atol=1e-5, rtol=1e-5), (out0, o_sq[0])
    assert jnp.allclose(out1, o_sq[1], atol=1e-5, rtol=1e-5), (out1, o_sq[1])

    # --- Larger mesh: exercises multi-step grid + partial tail block. ---
    N2 = 2500
    x2 = jax.random.uniform(k_x2, (N2, Nin), jnp.float32) * 10.0
    o_full = jax.block_until_ready(_forward_full(x2, w1, b1, w2))   # (Nout, N2)
    o_ref2 = ref_full(x2).T                                          # (Nout, N2)
    assert jnp.allclose(o_full, o_ref2, atol=1e-5, rtol=1e-5)

    print("KERNEL_OK")
</pallas_src>

<mosaic_0001>
module attributes {stable_mosaic.version = 11 : i64} {
  func.func @_mlp_kernel(%arg0: i32, %arg1: memref<10xf32, #tpu.memory_space<smem>>, %arg2: memref<10xf32, #tpu.memory_space<smem>>, %arg3: memref<20xf32, #tpu.memory_space<smem>>, %arg4: memref<2xf32, #tpu.memory_space<smem>>, %arg5: memref<8x128xf32, #tpu.memory_space<vmem>>, %arg6: memref<2x8x128xf32, #tpu.memory_space<vmem>>) attributes {dimension_semantics = [#tpu.dimension_semantics<parallel>], iteration_bounds = array<i64: 1>, scalar_prefetch = 0 : i64, scratch_operands = 0 : i64, tpu.core_type = #tpu.core_type<tc>, window_params = [{transform_indices = @transform_0, window_bounds = array<i64: 10>}, {transform_indices = @transform_1, window_bounds = array<i64: 10>}, {transform_indices = @transform_2, window_bounds = array<i64: 20>}, {transform_indices = @transform_3, window_bounds = array<i64: 2>}, {transform_indices = @transform_4, window_bounds = array<i64: 8, 128>}, {transform_indices = @transform_5, window_bounds = array<i64: 2, 8, 128>}]} {
    %c0 = arith.constant 0 : index
    %0 = memref.load %arg1[%c0] : memref<10xf32, #tpu.memory_space<smem>>
    %c1 = arith.constant 1 : index
    %1 = memref.load %arg1[%c1] : memref<10xf32, #tpu.memory_space<smem>>
    %c2 = arith.constant 2 : index
    %2 = memref.load %arg1[%c2] : memref<10xf32, #tpu.memory_space<smem>>
    %c3 = arith.constant 3 : index
    %3 = memref.load %arg1[%c3] : memref<10xf32, #tpu.memory_space<smem>>
    %c4 = arith.constant 4 : index
    %4 = memref.load %arg1[%c4] : memref<10xf32, #tpu.memory_space<smem>>
    %c5 = arith.constant 5 : index
    %5 = memref.load %arg1[%c5] : memref<10xf32, #tpu.memory_space<smem>>
    %c6 = arith.constant 6 : index
    %6 = memref.load %arg1[%c6] : memref<10xf32, #tpu.memory_space<smem>>
    %c7 = arith.constant 7 : index
    %7 = memref.load %arg1[%c7] : memref<10xf32, #tpu.memory_space<smem>>
    %c8 = arith.constant 8 : index
    %8 = memref.load %arg1[%c8] : memref<10xf32, #tpu.memory_space<smem>>
    %c9 = arith.constant 9 : index
    %9 = memref.load %arg1[%c9] : memref<10xf32, #tpu.memory_space<smem>>
    %c0_0 = arith.constant 0 : index
    %10 = memref.load %arg2[%c0_0] : memref<10xf32, #tpu.memory_space<smem>>
    %c1_1 = arith.constant 1 : index
    %11 = memref.load %arg2[%c1_1] : memref<10xf32, #tpu.memory_space<smem>>
    %c2_2 = arith.constant 2 : index
    %12 = memref.load %arg2[%c2_2] : memref<10xf32, #tpu.memory_space<smem>>
    %c3_3 = arith.constant 3 : index
    %13 = memref.load %arg2[%c3_3] : memref<10xf32, #tpu.memory_space<smem>>
    %c4_4 = arith.constant 4 : index
    %14 = memref.load %arg2[%c4_4] : memref<10xf32, #tpu.memory_space<smem>>
    %c5_5 = arith.constant 5 : index
    %15 = memref.load %arg2[%c5_5] : memref<10xf32, #tpu.memory_space<smem>>
    %c6_6 = arith.constant 6 : index
    %16 = memref.load %arg2[%c6_6] : memref<10xf32, #tpu.memory_space<smem>>
    %c7_7 = arith.constant 7 : index
    %17 = memref.load %arg2[%c7_7] : memref<10xf32, #tpu.memory_space<smem>>
    %c8_8 = arith.constant 8 : index
    %18 = memref.load %arg2[%c8_8] : memref<10xf32, #tpu.memory_space<smem>>
    %c9_9 = arith.constant 9 : index
    %19 = memref.load %arg2[%c9_9] : memref<10xf32, #tpu.memory_space<smem>>
    %c0_10 = arith.constant 0 : index
    %20 = memref.load %arg3[%c0_10] : memref<20xf32, #tpu.memory_space<smem>>
    %c1_11 = arith.constant 1 : index
    %21 = memref.load %arg3[%c1_11] : memref<20xf32, #tpu.memory_space<smem>>
    %c2_12 = arith.constant 2 : index
    %22 = memref.load %arg3[%c2_12] : memref<20xf32, #tpu.memory_space<smem>>
    %c3_13 = arith.constant 3 : index
    %23 = memref.load %arg3[%c3_13] : memref<20xf32, #tpu.memory_space<smem>>
    %c4_14 = arith.constant 4 : index
    %24 = memref.load %arg3[%c4_14] : memref<20xf32, #tpu.memory_space<smem>>
    %c5_15 = arith.constant 5 : index
    %25 = memref.load %arg3[%c5_15] : memref<20xf32, #tpu.memory_space<smem>>
    %c6_16 = arith.constant 6 : index
    %26 = memref.load %arg3[%c6_16] : memref<20xf32, #tpu.memory_space<smem>>
    %c7_17 = arith.constant 7 : index
    %27 = memref.load %arg3[%c7_17] : memref<20xf32, #tpu.memory_space<smem>>
    %c8_18 = arith.constant 8 : index
    %28 = memref.load %arg3[%c8_18] : memref<20xf32, #tpu.memory_space<smem>>
    %c9_19 = arith.constant 9 : index
    %29 = memref.load %arg3[%c9_19] : memref<20xf32, #tpu.memory_space<smem>>
    %c10 = arith.constant 10 : index
    %30 = memref.load %arg3[%c10] : memref<20xf32, #tpu.memory_space<smem>>
    %c11 = arith.constant 11 : index
    %31 = memref.load %arg3[%c11] : memref<20xf32, #tpu.memory_space<smem>>
    %c12 = arith.constant 12 : index
    %32 = memref.load %arg3[%c12] : memref<20xf32, #tpu.memory_space<smem>>
    %c13 = arith.constant 13 : index
    %33 = memref.load %arg3[%c13] : memref<20xf32, #tpu.memory_space<smem>>
    %c14 = arith.constant 14 : index
    %34 = memref.load %arg3[%c14] : memref<20xf32, #tpu.memory_space<smem>>
    %c15 = arith.constant 15 : index
    %35 = memref.load %arg3[%c15] : memref<20xf32, #tpu.memory_space<smem>>
    %c16 = arith.constant 16 : index
    %36 = memref.load %arg3[%c16] : memref<20xf32, #tpu.memory_space<smem>>
    %c17 = arith.constant 17 : index
    %37 = memref.load %arg3[%c17] : memref<20xf32, #tpu.memory_space<smem>>
    %c18 = arith.constant 18 : index
    %38 = memref.load %arg3[%c18] : memref<20xf32, #tpu.memory_space<smem>>
    %c19 = arith.constant 19 : index
    %39 = memref.load %arg3[%c19] : memref<20xf32, #tpu.memory_space<smem>>
    %c0_20 = arith.constant 0 : index
    %40 = memref.load %arg4[%c0_20] : memref<2xf32, #tpu.memory_space<smem>>
    %c1_21 = arith.constant 1 : index
    %41 = memref.load %arg4[%c1_21] : memref<2xf32, #tpu.memory_space<smem>>
    %c0_22 = arith.constant 0 : index
    %c0_23 = arith.constant 0 : index
    %42 = vector.load %arg5[%c0_22, %c0_23] : memref<8x128xf32, #tpu.memory_space<vmem>>, vector<8x128xf32>
    %43 = vector.broadcast %0 : f32 to vector<8x128xf32>
    %44 = arith.mulf %42, %43 : vector<8x128xf32>
    %45 = vector.broadcast %10 : f32 to vector<8x128xf32>
    %46 = arith.addf %44, %45 : vector<8x128xf32>
    %47 = math.tanh %46 : vector<8x128xf32>
    %48 = vector.broadcast %20 : f32 to vector<8x128xf32>
    %49 = arith.mulf %48, %47 : vector<8x128xf32>
    %50 = vector.broadcast %30 : f32 to vector<8x128xf32>
    %51 = arith.mulf %50, %47 : vector<8x128xf32>
    %52 = vector.broadcast %1 : f32 to vector<8x128xf32>
    %53 = arith.mulf %42, %52 : vector<8x128xf32>
    %54 = vector.broadcast %11 : f32 to vector<8x128xf32>
    %55 = arith.addf %53, %54 : vector<8x128xf32>
    %56 = math.tanh %55 : vector<8x128xf32>
    %57 = vector.broadcast %21 : f32 to vector<8x128xf32>
    %58 = arith.mulf %57, %56 : vector<8x128xf32>
    %59 = arith.addf %49, %58 : vector<8x128xf32>
    %60 = vector.broadcast %31 : f32 to vector<8x128xf32>
    %61 = arith.mulf %60, %56 : vector<8x128xf32>
    %62 = arith.addf %51, %61 : vector<8x128xf32>
    %63 = vector.broadcast %2 : f32 to vector<8x128xf32>
    %64 = arith.mulf %42, %63 : vector<8x128xf32>
    %65 = vector.broadcast %12 : f32 to vector<8x128xf32>
    %66 = arith.addf %64, %65 : vector<8x128xf32>
    %67 = math.tanh %66 : vector<8x128xf32>
    %68 = vector.broadcast %22 : f32 to vector<8x128xf32>
    %69 = arith.mulf %68, %67 : vector<8x128xf32>
    %70 = arith.addf %59, %69 : vector<8x128xf32>
    %71 = vector.broadcast %32 : f32 to vector<8x128xf32>
    %72 = arith.mulf %71, %67 : vector<8x128xf32>
    %73 = arith.addf %62, %72 : vector<8x128xf32>
    %74 = vector.broadcast %3 : f32 to vector<8x128xf32>
    %75 = arith.mulf %42, %74 : vector<8x128xf32>
    %76 = vector.broadcast %13 : f32 to vector<8x128xf32>
    %77 = arith.addf %75, %76 : vector<8x128xf32>
    %78 = math.tanh %77 : vector<8x128xf32>
    %79 = vector.broadcast %23 : f32 to vector<8x128xf32>
    %80 = arith.mulf %79, %78 : vector<8x128xf32>
    %81 = arith.addf %70, %80 : vector<8x128xf32>
    %82 = vector.broadcast %33 : f32 to vector<8x128xf32>
    %83 = arith.mulf %82, %78 : vector<8x128xf32>
    %84 = arith.addf %73, %83 : vector<8x128xf32>
    %85 = vector.broadcast %4 : f32 to vector<8x128xf32>
    %86 = arith.mulf %42, %85 : vector<8x128xf32>
    %87 = vector.broadcast %14 : f32 to vector<8x128xf32>
    %88 = arith.addf %86, %87 : vector<8x128xf32>
    %89 = math.tanh %88 : vector<8x128xf32>
    %90 = vector.broadcast %24 : f32 to vector<8x128xf32>
    %91 = arith.mulf %90, %89 : vector<8x128xf32>
    %92 = arith.addf %81, %91 : vector<8x128xf32>
    %93 = vector.broadcast %34 : f32 to vector<8x128xf32>
    %94 = arith.mulf %93, %89 : vector<8x128xf32>
    %95 = arith.addf %84, %94 : vector<8x128xf32>
    %96 = vector.broadcast %5 : f32 to vector<8x128xf32>
    %97 = arith.mulf %42, %96 : vector<8x128xf32>
    %98 = vector.broadcast %15 : f32 to vector<8x128xf32>
    %99 = arith.addf %97, %98 : vector<8x128xf32>
    %100 = math.tanh %99 : vector<8x128xf32>
    %101 = vector.broadcast %25 : f32 to vector<8x128xf32>
    %102 = arith.mulf %101, %100 : vector<8x128xf32>
    %103 = arith.addf %92, %102 : vector<8x128xf32>
    %104 = vector.broadcast %35 : f32 to vector<8x128xf32>
    %105 = arith.mulf %104, %100 : vector<8x128xf32>
    %106 = arith.addf %95, %105 : vector<8x128xf32>
    %107 = vector.broadcast %6 : f32 to vector<8x128xf32>
    %108 = arith.mulf %42, %107 : vector<8x128xf32>
    %109 = vector.broadcast %16 : f32 to vector<8x128xf32>
    %110 = arith.addf %108, %109 : vector<8x128xf32>
    %111 = math.tanh %110 : vector<8x128xf32>
    %112 = vector.broadcast %26 : f32 to vector<8x128xf32>
    %113 = arith.mulf %112, %111 : vector<8x128xf32>
    %114 = arith.addf %103, %113 : vector<8x128xf32>
    %115 = vector.broadcast %36 : f32 to vector<8x128xf32>
    %116 = arith.mulf %115, %111 : vector<8x128xf32>
    %117 = arith.addf %106, %116 : vector<8x128xf32>
    %118 = vector.broadcast %7 : f32 to vector<8x128xf32>
    %119 = arith.mulf %42, %118 : vector<8x128xf32>
    %120 = vector.broadcast %17 : f32 to vector<8x128xf32>
    %121 = arith.addf %119, %120 : vector<8x128xf32>
    %122 = math.tanh %121 : vector<8x128xf32>
    %123 = vector.broadcast %27 : f32 to vector<8x128xf32>
    %124 = arith.mulf %123, %122 : vector<8x128xf32>
    %125 = arith.addf %114, %124 : vector<8x128xf32>
    %126 = vector.broadcast %37 : f32 to vector<8x128xf32>
    %127 = arith.mulf %126, %122 : vector<8x128xf32>
    %128 = arith.addf %117, %127 : vector<8x128xf32>
    %129 = vector.broadcast %8 : f32 to vector<8x128xf32>
    %130 = arith.mulf %42, %129 : vector<8x128xf32>
    %131 = vector.broadcast %18 : f32 to vector<8x128xf32>
    %132 = arith.addf %130, %131 : vector<8x128xf32>
    %133 = math.tanh %132 : vector<8x128xf32>
    %134 = vector.broadcast %28 : f32 to vector<8x128xf32>
    %135 = arith.mulf %134, %133 : vector<8x128xf32>
    %136 = arith.addf %125, %135 : vector<8x128xf32>
    %137 = vector.broadcast %38 : f32 to vector<8x128xf32>
    %138 = arith.mulf %137, %133 : vector<8x128xf32>
    %139 = arith.addf %128, %138 : vector<8x128xf32>
    %140 = vector.broadcast %9 : f32 to vector<8x128xf32>
    %141 = arith.mulf %42, %140 : vector<8x128xf32>
    %142 = vector.broadcast %19 : f32 to vector<8x128xf32>
    %143 = arith.addf %141, %142 : vector<8x128xf32>
    %144 = math.tanh %143 : vector<8x128xf32>
    %145 = vector.broadcast %29 : f32 to vector<8x128xf32>
    %146 = arith.mulf %145, %144 : vector<8x128xf32>
    %147 = arith.addf %136, %146 : vector<8x128xf32>
    %148 = vector.broadcast %39 : f32 to vector<8x128xf32>
    %149 = arith.mulf %148, %144 : vector<8x128xf32>
    %150 = arith.addf %139, %149 : vector<8x128xf32>
    %151 = vector.broadcast %40 : f32 to vector<8x128xf32>
    %152 = arith.addf %147, %151 : vector<8x128xf32>
    %c0_24 = arith.constant 0 : index
    %c0_25 = arith.constant 0 : index
    %c0_26 = arith.constant 0 : index
    %153 = vector.load %arg6[%c0_24, %c0_25, %c0_26] : memref<2x8x128xf32, #tpu.memory_space<vmem>>, vector<1x8x128xf32>
    %154 = vector.shape_cast %153 : vector<1x8x128xf32> to vector<8x128xf32>
    %155 = vector.shape_cast %152 : vector<8x128xf32> to vector<1x8x128xf32>
    tpu.vector_store %arg6[%c0_24, %c0_25, %c0_26], %155 {strides = array<i32>} : memref<2x8x128xf32, #tpu.memory_space<vmem>>, vector<1x8x128xf32>,
    %156 = vector.broadcast %41 : f32 to vector<8x128xf32>
    %157 = arith.addf %150, %156 : vector<8x128xf32>
    %c1_27 = arith.constant 1 : index
    %c0_28 = arith.constant 0 : index
    %c0_29 = arith.constant 0 : index
    %158 = vector.load %arg6[%c1_27, %c0_28, %c0_29] : memref<2x8x128xf32, #tpu.memory_space<vmem>>, vector<1x8x128xf32>
    %159 = vector.shape_cast %158 : vector<1x8x128xf32> to vector<8x128xf32>
    %160 = vector.shape_cast %157 : vector<8x128xf32> to vector<1x8x128xf32>
    tpu.vector_store %arg6[%c1_27, %c0_28, %c0_29], %160 {strides = array<i32>} : memref<2x8x128xf32, #tpu.memory_space<vmem>>, vector<1x8x128xf32>,
    return
  }
  func.func @transform_0(%arg0: i32) -> i32 {
    %c0_i32 = arith.constant 0 : i32
    %c0_i32_0 = arith.constant 0 : i32
    return %c0_i32 : i32
  }
  func.func @transform_1(%arg0: i32) -> i32 {
    %c0_i32 = arith.constant 0 : i32
    %c0_i32_0 = arith.constant 0 : i32
    return %c0_i32 : i32
  }
  func.func @transform_2(%arg0: i32) -> i32 {
    %c0_i32 = arith.constant 0 : i32
    %c0_i32_0 = arith.constant 0 : i32
    return %c0_i32 : i32
  }
  func.func @transform_3(%arg0: i32) -> i32 {
    %c0_i32 = arith.constant 0 : i32
    %c0_i32_0 = arith.constant 0 : i32
    return %c0_i32 : i32
  }
  func.func @transform_4(%arg0: i32) -> (i32, i32) {
    %c0_i32 = arith.constant 0 : i32
    %c0_i32_0 = arith.constant 0 : i32
    return %arg0, %c0_i32 : i32, i32
  }
  func.func @transform_5(%arg0: i32) -> (i32, i32, i32) {
    %c0_i32 = arith.constant 0 : i32
    %c0_i32_0 = arith.constant 0 : i32
    %c0_i32_1 = arith.constant 0 : i32
    return %c0_i32, %arg0, %c0_i32_0 : i32, i32, i32
  }
}

</mosaic_0001>

<llo_original>
// kernel: tpu_custom_call.1
$region0: #{tpu_custom_call.1}
  #allocation0 [shape = 'u32[]', space=smem, size = 0x4, offset = 0x4, fixed_abs, tag = 'smem constant byte address 0x4 - core index']
  #allocation1 [shape = 'u32[72,128]{1,0:T(1,128)}', space=vmem, size = 0x9000, scoped, tag = 'internal scratch']
  %s0 = inlined_call_operand.hbm [shape: f32[10], index: 0, kind: input, shape index: {}]
  %s1 = inlined_call_operand.hbm [shape: f32[10], index: 1, kind: input, shape index: {}]
  %s2 = inlined_call_operand.vmem [shape: f32[20], index: 2, kind: input, shape index: {}]
  %s3 = inlined_call_operand.vmem [shape: f32[2], index: 3, kind: input, shape index: {}]
  %s4 = inlined_call_operand.hbm [shape: f32[8,128], index: 4, kind: input, shape index: {}]
  %s5 = inlined_call_operand.hbm [shape: f32[2,8,128], index: 5, kind: output, shape index: {}]
  %s6 = sld [smem:[#allocation0]]
  $region50: #{tpu_custom_call.1} parent=0
    _
  %s8 = ssub.s32 1, %s6
  %s9 = scalar_select 0, %s8, %s6
  $region1: #{tpu_custom_call.1} parent=0
    #allocation2 [shape = 'u8[512]{0}', space=smem, size = 0x200, scoped, tag = 'input window, operand 0, single buffered']
    #allocation3 [shape = 's32[1]{0}', space=sflag, size = 0x4, scoped, tag = 'scoped memory for tpu_custom_call.1']
    #allocation4 [shape = 's32[1]{0}', space=sflag, size = 0x4, scoped, tag = 'scoped memory for tpu_custom_call.1']
    #allocation5 [shape = 's32[1]{0}', space=sflag, size = 0x4, scoped, tag = 'scoped memory for tpu_custom_call.1']
    #allocation6 [shape = 's32[1]{0}', space=sflag, size = 0x4, scoped, tag = 'scoped memory for tpu_custom_call.1']
    #allocation7 [shape = 'u8[512]{0}', space=smem, size = 0x200, scoped, tag = 'input window, operand 1, single buffered']
    #allocation8 [shape = 's32[1]{0}', space=sflag, size = 0x4, scoped, tag = 'scoped memory for tpu_custom_call.1']
    #allocation9 [shape = 'u8[512]{0}', space=smem, size = 0x200, scoped, tag = 'input window, operand 2, single buffered']
    #allocation10 [shape = 'u8[512]{0}', space=smem, size = 0x200, scoped, tag = 'input window, operand 3, single buffered']
    #allocation11 [shape = 's32[1]{0}', space=sflag, size = 0x4, scoped, tag = 'scoped memory for tpu_custom_call.1']
    #allocation12 [shape = 'u8[4096]{0}', space=vmem, size = 0x1000, scoped, tag = 'input window, operand 4, single buffered']
    #allocation13 [shape = 'u8[8192]{0}', space=vmem, size = 0x2000, scoped, tag = 'output window, operand 0, single buffered']
    %10 = vsyncpa [#allocation5], 0
    %11 = vsyncpa [#allocation8], 0
    %12 = vsyncpa [#allocation6], 0
    %13 = vsyncpa [#allocation11], 0
    %14 = vsyncpa [#allocation3], 0
    %15 = vsyncpa [#allocation4], 0
    // Predicated region
    $region2: #{tpu_custom_call.1} parent=1 // pred_check
      _
    $region3: #{tpu_custom_call.1} parent=1 // pred_check_branch
      %17 = sbr.rel (0) target = $region5
    $region4: #{tpu_custom_call.1} parent=1 // pred_region
      %19 = vsyncadd [#allocation5], 0
      %s21 = sshll.u32 %s0, 4
      %s22 = int_to_ptr.hbm [resolvable:$true] %s21
      %24 = dma.hbm_to_smem %s22, 16, [#allocation2], [#allocation5]
    $region5: #{tpu_custom_call.1} parent=1 // pred_fallthru
      _
    // Predicated region
    $region6: #{tpu_custom_call.1} parent=1 // pred_check
      _
    $region7: #{tpu_custom_call.1} parent=1 // pred_check_branch
      %26 = sbr.rel (0) target = $region9
    $region8: #{tpu_custom_call.1} parent=1 // pred_region
      %28 = vsyncadd [#allocation8], 0
      %s30 = sshll.u32 %s1, 4
      %s31 = int_to_ptr.hbm [resolvable:$true] %s30
      %33 = dma.hbm_to_smem %s31, 16, [#allocation7], [#allocation8]
    $region9: #{tpu_custom_call.1} parent=1 // pred_fallthru
      _
    // Predicated region
    $region10: #{tpu_custom_call.1} parent=1 // pred_check
      _
    $region11: #{tpu_custom_call.1} parent=1 // pred_check_branch
      %35 = sbr.rel (0) target = $region13
    $region12: #{tpu_custom_call.1} parent=1 // pred_region
      %37 = vsyncadd [#allocation6], 0
      %s39 = sshll.u32 %s2, 4
      %s40 = int_to_ptr.vmem [resolvable:$true] %s39
      %42 = dma.vmem_to_smem %s40, 16, [#allocation9], [#allocation6]
    $region13: #{tpu_custom_call.1} parent=1 // pred_fallthru
      _
    // Predicated region
    $region14: #{tpu_custom_call.1} parent=1 // pred_check
      _
    $region15: #{tpu_custom_call.1} parent=1 // pred_check_branch
      %44 = sbr.rel (0) target = $region17
    $region16: #{tpu_custom_call.1} parent=1 // pred_region
      %46 = vsyncadd [#allocation11], 0
      %s48 = sshll.u32 %s3, 4
      %s49 = int_to_ptr.vmem [resolvable:$true] %s48
      %51 = dma.vmem_to_smem %s49, 16, [#allocation10], [#allocation11]
    $region17: #{tpu_custom_call.1} parent=1 // pred_fallthru
      _
    // Predicated region
    $region18: #{tpu_custom_call.1} parent=1 // pred_check
      _
    $region19: #{tpu_custom_call.1} parent=1 // pred_check_branch
      %53 = sbr.rel (0) target = $region21
    $region20: #{tpu_custom_call.1} parent=1 // pred_region
      %55 = vsyncadd [#allocation3], 0
      %s57 = sshll.u32 %s4, 4
      %s58 = int_to_ptr.hbm [resolvable:$true] %s57
      %s59 = sshll.u32 [#allocation12], 4
      %s60 = int_to_ptr.vmem [resolvable:$true] %s59
      %62 = dma.hbm_to_vmem [thread:$0]  %s58, 128, %s60, [#allocation3]
    $region21: #{tpu_custom_call.1} parent=1 // pred_fallthru
      _
    // Predicated region
    $region22: #{tpu_custom_call.1} parent=1 // pred_check
      _
    $region23: #{tpu_custom_call.1} parent=1 // pred_check_branch
      %64 = sbr.rel (0) target = $region25
    $region24: #{tpu_custom_call.1} parent=1 // pred_region
      %66 = dma.done [#allocation5], 16
    $region25: #{tpu_custom_call.1} parent=1 // pred_fallthru
      _
    // Predicated region
    $region26: #{tpu_custom_call.1} parent=1 // pred_check
      _
    $region27: #{tpu_custom_call.1} parent=1 // pred_check_branch
      %68 = sbr.rel (0) target = $region29
    $region28: #{tpu_custom_call.1} parent=1 // pred_region
      %70 = dma.done [#allocation8], 16
    $region29: #{tpu_custom_call.1} parent=1 // pred_fallthru
      _
    // Predicated region
    $region30: #{tpu_custom_call.1} parent=1 // pred_check
      _
    $region31: #{tpu_custom_call.1} parent=1 // pred_check_branch
      %72 = sbr.rel (0) target = $region33
    $region32: #{tpu_custom_call.1} parent=1 // pred_region
      %74 = dma.done [#allocation6], 16
    $region33: #{tpu_custom_call.1} parent=1 // pred_fallthru
      _
    // Predicated region
    $region34: #{tpu_custom_call.1} parent=1 // pred_check
      _
    $region35: #{tpu_custom_call.1} parent=1 // pred_check_branch
      %76 = sbr.rel (0) target = $region37
    $region36: #{tpu_custom_call.1} parent=1 // pred_region
      %78 = dma.done [#allocation11], 16
    $region37: #{tpu_custom_call.1} parent=1 // pred_fallthru
      _
    // Predicated region
    $region38: #{tpu_custom_call.1} parent=1 // pred_check
      _
    $region39: #{tpu_custom_call.1} parent=1 // pred_check_branch
      %80 = sbr.rel (0) target = $region41
    $region40: #{tpu_custom_call.1} parent=1 // pred_region
      %82 = dma.done [#allocation3], 128
    $region41: #{tpu_custom_call.1} parent=1 // pred_fallthru
      _
    %83 = sfence
    %s84 = sld [smem:[#allocation2]]
    %s85 = sld [smem:[#allocation2 + $0x1]]
    %s86 = sld [smem:[#allocation2 + $0x2]]
    %s87 = sld [smem:[#allocation2 + $0x3]]
    %s88 = sld [smem:[#allocation2 + $0x4]]
    %s89 = sld [smem:[#allocation2 + $0x5]]
    %s90 = sld [smem:[#allocation2 + $0x6]]
    %s91 = sld [smem:[#allocation2 + $0x7]]
    %s92 = sld [smem:[#allocation2 + $0x8]]
    %s93 = sld [smem:[#allocation2 + $0x9]]
    %s94 = sld [smem:[#allocation7]]
    %s95 = sld [smem:[#allocation7 + $0x1]]
    %s96 = sld [smem:[#allocation7 + $0x2]]
    %s97 = sld [smem:[#allocation7 + $0x3]]
    %s98 = sld [smem:[#allocation7 + $0x4]]
    %s99 = sld [smem:[#allocation7 + $0x5]]
    %s100 = sld [smem:[#allocation7 + $0x6]]
    %s101 = sld [smem:[#allocation7 + $0x7]]
    %s102 = sld [smem:[#allocation7 + $0x8]]
    %s103 = sld [smem:[#allocation7 + $0x9]]
    %s104 = sld [smem:[#allocation9]]
    %s105 = sld [smem:[#allocation9 + $0x1]]
    %s106 = sld [smem:[#allocation9 + $0x2]]
    %s107 = sld [smem:[#allocation9 + $0x3]]
    %s108 = sld [smem:[#allocation9 + $0x4]]
    %s109 = sld [smem:[#allocation9 + $0x5]]
    %s110 = sld [smem:[#allocation9 + $0x6]]
    %s111 = sld [smem:[#allocation9 + $0x7]]
    %s112 = sld [smem:[#allocation9 + $0x8]]
    %s113 = sld [smem:[#allocation9 + $0x9]]
    %s114 = sld [smem:[#allocation9 + $0xa]]
    %s115 = sld [smem:[#allocation9 + $0xb]]
    %s116 = sld [smem:[#allocation9 + $0xc]]
    %s117 = sld [smem:[#allocation9 + $0xd]]
    %s118 = sld [smem:[#allocation9 + $0xe]]
    %s119 = sld [smem:[#allocation9 + $0xf]]
    %s120 = sld [smem:[#allocation9 + $0x10]]
    %s121 = sld [smem:[#allocation9 + $0x11]]
    %s122 = sld [smem:[#allocation9 + $0x12]]
    %s123 = sld [smem:[#allocation9 + $0x13]]
    %s124 = sld [smem:[#allocation10]]
    %s125 = sld [smem:[#allocation10 + $0x1]]
    %v126 = vld [vmem:[#allocation12] sm:$0xff]
    %v127 = vstv %s84
    %v128 = vmul.f32 %v126, %v127
    %v129 = vstv %s94
    %v130 = vadd.f32 %v128, %v129
    %v131 = vtanh.pop %v130
    %v132 = vstv %s104
    %v133 = vmul.f32 %v132, %v131
    %v134 = vstv %s114
    %v135 = vmul.f32 %v134, %v131
    %v136 = vstv %s85
    %v137 = vmul.f32 %v126, %v136
    %v138 = vstv %s95
    %v139 = vadd.f32 %v137, %v138
    %v140 = vtanh.pop %v139
    %v141 = vstv %s105
    %v142 = vmul.f32 %v141, %v140
    %v143 = vadd.f32 %v133, %v142
    %v144 = vstv %s115
    %v145 = vmul.f32 %v144, %v140
    %v146 = vadd.f32 %v135, %v145
    %v147 = vstv %s86
    %v148 = vmul.f32 %v126, %v147
    %v149 = vstv %s96
    %v150 = vadd.f32 %v148, %v149
    %v151 = vtanh.pop %v150
    %v152 = vstv %s106
    %v153 = vmul.f32 %v152, %v151
    %v154 = vadd.f32 %v143, %v153
    %v155 = vstv %s116
    %v156 = vmul.f32 %v155, %v151
    %v157 = vadd.f32 %v146, %v156
    %v158 = vstv %s87
    %v159 = vmul.f32 %v126, %v158
    %v160 = vstv %s97
    %v161 = vadd.f32 %v159, %v160
    %v162 = vtanh.pop %v161
    %v163 = vstv %s107
    %v164 = vmul.f32 %v163, %v162
    %v165 = vadd.f32 %v154, %v164
    %v166 = vstv %s117
    %v167 = vmul.f32 %v166, %v162
    %v168 = vadd.f32 %v157, %v167
    %v169 = vstv %s88
    %v170 = vmul.f32 %v126, %v169
    %v171 = vstv %s98
    %v172 = vadd.f32 %v170, %v171
    %v173 = vtanh.pop %v172
    %v174 = vstv %s108
    %v175 = vmul.f32 %v174, %v173
    %v176 = vadd.f32 %v165, %v175
    %v177 = vstv %s118
    %v178 = vmul.f32 %v177, %v173
    %v179 = vadd.f32 %v168, %v178
    %v180 = vstv %s89
    %v181 = vmul.f32 %v126, %v180
    %v182 = vstv %s99
    %v183 = vadd.f32 %v181, %v182
    %v184 = vtanh.pop %v183
    %v185 = vstv %s109
    %v186 = vmul.f32 %v185, %v184
    %v187 = vadd.f32 %v176, %v186
    %v188 = vstv %s119
    %v189 = vmul.f32 %v188, %v184
    %v190 = vadd.f32 %v179, %v189
    %v191 = vstv %s90
    %v192 = vmul.f32 %v126, %v191
    %v193 = vstv %s100
    %v194 = vadd.f32 %v192, %v193
    %v195 = vtanh.pop %v194
    %v196 = vstv %s110
    %v197 = vmul.f32 %v196, %v195
    %v198 = vadd.f32 %v187, %v197
    %v199 = vstv %s120
    %v200 = vmul.f32 %v199, %v195
    %v201 = vadd.f32 %v190, %v200
    %v202 = vstv %s91
    %v203 = vmul.f32 %v126, %v202
    %v204 = vstv %s101
    %v205 = vadd.f32 %v203, %v204
    %v206 = vtanh.pop %v205
    %v207 = vstv %s111
    %v208 = vmul.f32 %v207, %v206
    %v209 = vadd.f32 %v198, %v208
    %v210 = vstv %s121
    %v211 = vmul.f32 %v210, %v206
    %v212 = vadd.f32 %v201, %v211
    %v213 = vstv %s92
    %v214 = vmul.f32 %v126, %v213
    %v215 = vstv %s102
    %v216 = vadd.f32 %v214, %v215
    %v217 = vtanh.pop %v216
    %v218 = vstv %s112
    %v219 = vmul.f32 %v218, %v217
    %v220 = vadd.f32 %v209, %v219
    %v221 = vstv %s122
    %v222 = vmul.f32 %v221, %v217
    %v223 = vadd.f32 %v212, %v222
    %v224 = vstv %s93
    %v225 = vmul.f32 %v126, %v224
    %v226 = vstv %s103
    %v227 = vadd.f32 %v225, %v226
    %v228 = vtanh.pop %v227
    %v229 = vstv %s113
    %v230 = vmul.f32 %v229, %v228
    %v231 = vadd.f32 %v220, %v230
    %v232 = vstv %s123
    %v233 = vmul.f32 %v232, %v228
    %v234 = vadd.f32 %v223, %v233
    %v235 = vstv %s124
    %v236 = vadd.f32 %v231, %v235
    %237 = vst [vmem:[#allocation13] sm:$0xff] %v236
    %v238 = vstv %s125
    %v239 = vadd.f32 %v234, %v238
    %s240 = scalar_lea.vmem [#allocation13], 8
    %241 = vst [vmem:[%s240] sm:$0xff] %v239
    // Predicated region
    $region42: #{tpu_custom_call.1} parent=1 // pred_check
      _
    $region43: #{tpu_custom_call.1} parent=1 // pred_check_branch
      %243 = sbr.rel (0) target = $region45
    $region44: #{tpu_custom_call.1} parent=1 // pred_region
      %245 = vsyncadd [#allocation4], 0
      %s246 = sshll.u32 [#allocation13], 4
      %s247 = int_to_ptr.vmem [resolvable:$true] %s246
      %s248 = sshll.u32 %s5, 4
      %s249 = int_to_ptr.hbm [resolvable:$true] %s248
      %254 = dma.vmem_to_hbm [thread:$0]  %s247, 256, %s249, [#allocation4], 128, 128, 8
    $region45: #{tpu_custom_call.1} parent=1 // pred_fallthru
      _
    // Predicated region
    $region46: #{tpu_custom_call.1} parent=1 // pred_check
      _
    $region47: #{tpu_custom_call.1} parent=1 // pred_check_branch
      %256 = sbr.rel (0) target = $region49
    $region48: #{tpu_custom_call.1} parent=1 // pred_region
      %258 = dma.done [#allocation4], 256
    $region49: #{tpu_custom_call.1} parent=1 // pred_fallthru
      _
    %259 = vsyncpa [#allocation3], 1
    %260 = vsyncpa [#allocation4], 1
    %261 = vsyncpa [#allocation5], 1
    %262 = vsyncpa [#allocation8], 1
    %263 = vsyncpa [#allocation6], 1
    %264 = vsyncpa [#allocation11], 1

</llo_original>
